<compile_context>
chip_gen: v7x
topology: tpu7x:2x2x1
jax: 0.10.0
libtpu: 0.0.40
codegen_flags: <defaults>
</compile_context>

<pallas_src>
import functools

import jax
import jax.numpy as jnp
from jax.experimental import pallas as pl
from jax.experimental.pallas import tpu as pltpu


# ---------------------------------------------------------------------------
# helpers
# ---------------------------------------------------------------------------
_LANE = 128
_FUSED_VMEM_BUDGET = 40 * 2**20   # conservative vs v7x's 64 MiB physical VMEM
_FUSED_VMEM_LIMIT = 48 * 2**20    # scoped VMEM granted to the fused kernel


def _round_up(x, m):
    return ((x + m - 1) // m) * m


def _pick_tile(dim, cap, mult):
    """Largest tile <= cap that divides `dim`.

    Prefers multiples of 256 (full-width passes on the v6e/v7x 2x256^2 MXU)
    before falling back to `mult` granularity; returns the full dim when
    dim <= cap or nothing fits.
    """
    if dim <= cap:
        return dim
    for m in sorted({max(mult, 256), mult}, reverse=True):
        t = cap - (cap % m)
        while t >= m:
            if dim % t == 0:
                return t
            t -= m
    # TODO(synk): poorly-factorable dims fall back to one full-dim block; a
    # pad-and-mask path would be needed to bound VMEM in that case.
    return dim


def _fused_vmem_bytes(tb, d_in, latent, d_out):
    """Conservative VMEM estimate for the fully-fused path."""
    two_l = 2 * latent
    w_f32 = (d_in * two_l + latent * d_out + two_l + d_out) * 4   # resident f32 weights/bias
    w_bf16 = (d_in * two_l + latent * d_out) * 2                  # in-kernel bf16 copies
    act = tb * (d_in + two_l + 4 * latent + d_out) * 4            # x, h, mu/logvar/z/eps, recon
    return 2 * (w_f32 + act) + w_bf16                             # ~double-buffered tiles


# ---------------------------------------------------------------------------
# fully-fused VAE forward: one pallas_call, grid over batch tiles only
# ---------------------------------------------------------------------------
def _vae_fused_kernel(x_ref, we_ref, be_ref, wd_ref, bd_ref, eps_ref,
                      recon_ref, mu_ref, logvar_ref, z_ref, *, latent):
    # per-tile bf16 casts inside the kernel: no wrapper-side HBM bf16 copies.
    xb = x_ref[...].astype(jnp.bfloat16)
    we = we_ref[...].astype(jnp.bfloat16)

    # encoder: h = x @ W_enc^T + b  ->  [mu | logvar] fused along lanes.
    h = jnp.dot(xb, we, preferred_element_type=jnp.float32)
    h = h + be_ref[...].astype(jnp.float32)
    mu = h[:, :latent]
    logvar = h[:, latent:]

    # reparameterization trick; exp goes to the EUP slot (free under the matmuls).
    z = eps_ref[...].astype(jnp.float32) * jnp.exp(0.5 * logvar) + mu

    # decoder: recon = z @ W_dec^T + b
    wd = wd_ref[...].astype(jnp.bfloat16)
    recon = jnp.dot(z.astype(jnp.bfloat16), wd, preferred_element_type=jnp.float32)
    recon = recon + bd_ref[...].astype(jnp.float32)

    recon_ref[...] = recon.astype(recon_ref.dtype)
    mu_ref[...] = mu.astype(mu_ref.dtype)
    logvar_ref[...] = logvar.astype(logvar_ref.dtype)
    z_ref[...] = z.astype(z_ref.dtype)


def _vae_forward_fused(x, w_enc_t, b_enc, w_dec_t, b_dec, eps, *, tb):
    B, d_in = x.shape
    latent, d_out = w_dec_t.shape
    two_l = w_enc_t.shape[1]
    out_dtype = x.dtype
    grid = (B // tb,)

    cost = pl.CostEstimate(
        flops=2 * B * (d_in * two_l + latent * d_out),
        transcendentals=B * latent,
        bytes_accessed=4 * (B * (d_in + two_l + 3 * latent + d_out)
                            + d_in * two_l + latent * d_out + two_l + d_out),
    )

    kernel = functools.partial(_vae_fused_kernel, latent=latent)
    return pl.pallas_call(
        kernel,
        out_shape=(jax.ShapeDtypeStruct((B, d_out), out_dtype),
                   jax.ShapeDtypeStruct((B, latent), out_dtype),
                   jax.ShapeDtypeStruct((B, latent), out_dtype),
                   jax.ShapeDtypeStruct((B, latent), out_dtype)),
        grid_spec=pltpu.PrefetchScalarGridSpec(
            num_scalar_prefetch=0,
            grid=grid,
            in_specs=[
                pl.BlockSpec((tb, d_in), lambda i: (i, 0)),        # x tile
                pl.BlockSpec((d_in, two_l), lambda i: (0, 0)),     # enc weight (resident)
                pl.BlockSpec((1, two_l), lambda i: (0, 0)),        # enc bias
                pl.BlockSpec((latent, d_out), lambda i: (0, 0)),   # dec weight (resident)
                pl.BlockSpec((1, d_out), lambda i: (0, 0)),        # dec bias
                pl.BlockSpec((tb, latent), lambda i: (i, 0)),      # eps tile
            ],
            out_specs=(
                pl.BlockSpec((tb, d_out), lambda i: (i, 0)),       # recon
                pl.BlockSpec((tb, latent), lambda i: (i, 0)),      # mu
                pl.BlockSpec((tb, latent), lambda i: (i, 0)),      # logvar
                pl.BlockSpec((tb, latent), lambda i: (i, 0)),      # z
            ),
        ),
        compiler_params=pltpu.CompilerParams(
            dimension_semantics=("parallel",),
            vmem_limit_bytes=_FUSED_VMEM_LIMIT,
        ),
        cost_estimate=cost,
    )(x, w_enc_t, b_enc, w_dec_t, b_dec, eps)


# ---------------------------------------------------------------------------
# tiled fallback (large shapes):  y = x @ w_t + bias
# ---------------------------------------------------------------------------
def _linear_kernel(x_ref, w_ref, b_ref, o_ref, acc_ref):
    k = pl.program_id(2)

    @pl.when(k == 0)
    def _():
        acc_ref[...] = jnp.zeros_like(acc_ref)

    # per-tile bf16 casts, f32 MXU accumulation, no in-kernel transpose.
    acc_ref[...] += jnp.dot(x_ref[...].astype(jnp.bfloat16),
                            w_ref[...].astype(jnp.bfloat16),
                            preferred_element_type=jnp.float32)

    @pl.when(k == pl.num_programs(2) - 1)
    def _():
        o_ref[...] = (acc_ref[...] + b_ref[...].astype(jnp.float32)).astype(o_ref.dtype)


def tiled_linear(x, w_t, bias, *, tm_cap=256, tn_cap=512, tk_cap=512):
    """x: (M, K), w_t: (K, N) pre-transposed, bias: (1, N) -> (M, N)."""
    M, K = x.shape
    K2, N = w_t.shape
    assert K == K2 and bias.shape == (1, N)

    tm = _pick_tile(M, tm_cap, 16)          # 16: bf16 sublane packing
    tn = _pick_tile(N, tn_cap, _LANE)
    tk = _pick_tile(K, tk_cap, _LANE)
    gi, gj, gk = pl.cdiv(M, tm), pl.cdiv(N, tn), pl.cdiv(K, tk)

    if gi == 1:
        # small-M: MXU work per K-step is short; triple-buffer the weight stream.
        w_spec = pl.BlockSpec((tk, tn), lambda j, i, k: (k, j),
                              pipeline_mode=pl.Buffered(3))
    else:
        w_spec = pl.BlockSpec((tk, tn), lambda j, i, k: (k, j))

    cost = pl.CostEstimate(
        flops=2 * M * N * K, transcendentals=0,
        bytes_accessed=4 * (M * K + K * N + M * N + N),
    )

    return pl.pallas_call(
        _linear_kernel,
        out_shape=jax.ShapeDtypeStruct((M, N), x.dtype),
        grid_spec=pltpu.PrefetchScalarGridSpec(
            num_scalar_prefetch=0,
            grid=(gj, gi, gk),               # j outermost, k innermost (accumulator)
            in_specs=[
                pl.BlockSpec((tm, tk), lambda j, i, k: (i, k)),   # x tile
                w_spec,                                           # weight tile (K, N)
                pl.BlockSpec((1, tn), lambda j, i, k: (0, j)),    # bias tile
            ],
            out_specs=pl.BlockSpec((tm, tn), lambda j, i, k: (i, j)),
            scratch_shapes=[pltpu.VMEM((tm, tn), jnp.float32)],
        ),
        compiler_params=pltpu.CompilerParams(
            dimension_semantics=("parallel", "parallel", "arbitrary"),
        ),
        cost_estimate=cost,
    )(x, w_t, bias)


# tiled decoder with the reparameterization fused into the K-loop:
#   z_tile = eps_tile * exp(0.5 * logvar_tile) + mu_tile   (mu/logvar read from h)
#   acc   += z_tile @ w_tile
def _decoder_reparam_kernel(mu_ref, lv_ref, eps_ref, w_ref, b_ref,
                            o_ref, z_ref, acc_ref):
    k = pl.program_id(2)

    @pl.when(k == 0)
    def _():
        acc_ref[...] = jnp.zeros_like(acc_ref)

    z = (eps_ref[...].astype(jnp.float32)
         * jnp.exp(0.5 * lv_ref[...].astype(jnp.float32))
         + mu_ref[...].astype(jnp.float32))
    z_ref[...] = z.astype(z_ref.dtype)      # full tile written every step -> safe flush
    acc_ref[...] += jnp.dot(z.astype(jnp.bfloat16),
                            w_ref[...].astype(jnp.bfloat16),
                            preferred_element_type=jnp.float32)

    @pl.when(k == pl.num_programs(2) - 1)
    def _():
        o_ref[...] = (acc_ref[...] + b_ref[...].astype(jnp.float32)).astype(o_ref.dtype)


def tiled_decoder_reparam(h, eps, w_dec_t, b_dec, *, tm_cap=256, tn_cap=512, tk_cap=512):
    """recon, z  from  h = [mu | logvar], eps, decoder weight (latent, d_out)."""
    M, two_l = h.shape
    latent = two_l // 2
    K, N = w_dec_t.shape
    assert K == latent and eps.shape == (M, latent) and b_dec.shape == (1, N)

    tm = _pick_tile(M, tm_cap, 16)
    tn = _pick_tile(N, tn_cap, _LANE)
    tk = _pick_tile(latent, tk_cap, _LANE)
    gi, gj, gk = pl.cdiv(M, tm), pl.cdiv(N, tn), pl.cdiv(latent, tk)

    if gi == 1:
        w_spec = pl.BlockSpec((tk, tn), lambda j, i, k: (k, j),
                              pipeline_mode=pl.Buffered(3))
    else:
        w_spec = pl.BlockSpec((tk, tn), lambda j, i, k: (k, j))

    return pl.pallas_call(
        _decoder_reparam_kernel,
        out_shape=(jax.ShapeDtypeStruct((M, N), h.dtype),
                   jax.ShapeDtypeStruct((M, latent), h.dtype)),
        grid_spec=pltpu.PrefetchScalarGridSpec(
            num_scalar_prefetch=0,
            grid=(gj, gi, gk),
            in_specs=[
                pl.BlockSpec((tm, tk), lambda j, i, k: (i, k)),        # mu tile (from h)
                pl.BlockSpec((tm, tk), lambda j, i, k: (i, k + gk)),   # logvar tile (from h)
                pl.BlockSpec((tm, tk), lambda j, i, k: (i, k)),        # eps tile
                w_spec,                                                # decoder weight tile
                pl.BlockSpec((1, tn), lambda j, i, k: (0, j)),         # bias tile
            ],
            out_specs=(pl.BlockSpec((tm, tn), lambda j, i, k: (i, j)),   # recon
                       pl.BlockSpec((tm, tk), lambda j, i, k: (i, k))),  # z
            scratch_shapes=[pltpu.VMEM((tm, tn), jnp.float32)],
        ),
        compiler_params=pltpu.CompilerParams(
            dimension_semantics=("parallel", "parallel", "arbitrary"),
        ),
    )(h, h, eps, w_dec_t, b_dec)


# ---------------------------------------------------------------------------
# VAE forward (mirrors VAE.forward; returns (recon, mu, logvar, z))
# ---------------------------------------------------------------------------
def vae_forward(x, params, eps, *, force_tiled=False, tb_cap=256):
    w_enc_t, b_enc, w_dec_t, b_dec = params
    B, d_in = x.shape
    latent, d_out = w_dec_t.shape

    # Pad the batch to a multiple of 16 (bf16 sublane packing) and, when
    # possible, give the batch grid >=2 parallel points so both v7x TCs work.
    b_pad = max(16, _round_up(B, 16))
    if b_pad != B:
        x = jnp.pad(x, ((0, b_pad - B), (0, 0)))
        eps = jnp.pad(eps, ((0, b_pad - B), (0, 0)))

    half = b_pad // 2
    tb = half if half <= tb_cap else _pick_tile(b_pad, tb_cap, 16)

    fits = _fused_vmem_bytes(tb, d_in, latent, d_out) <= _FUSED_VMEM_BUDGET
    if fits and not force_tiled:
        # single launch: encoder -> reparam -> decoder, all VMEM-resident.
        recon, mu, logvar, z = _vae_forward_fused(
            x, w_enc_t, b_enc, w_dec_t, b_dec, eps, tb=tb)
    else:
        # tiled fallback: encoder matmul -> h; reparam fused into decoder matmul.
        h = tiled_linear(x, w_enc_t, b_enc)
        recon, z = tiled_decoder_reparam(h, eps, w_dec_t, b_dec)
        mu, logvar = h[:, :latent], h[:, latent:]   # lazy slices for API return only

    if b_pad != B:
        recon, mu, logvar, z = recon[:B], mu[:B], logvar[:B], z[:B]
    # TODO(synk): self.latent_norm (BatchNorm1d) is declared in __init__ but never
    # used in VAE.forward, so it is intentionally not implemented here.
    return recon, mu, logvar, z


def vae_forward_ref(x, params, eps, compute_dtype=jnp.bfloat16):
    """Pure-JAX reference mirroring the PyTorch forward (same compute dtype)."""
    w_enc_t, b_enc, w_dec_t, b_dec = params
    latent = w_dec_t.shape[0]

    def lin(a, w_t, b):
        return jnp.dot(a.astype(compute_dtype), w_t.astype(compute_dtype),
                       preferred_element_type=jnp.float32) + b

    h = lin(x, w_enc_t, b_enc)
    mu, logvar = h[:, :latent], h[:, latent:]
    z = eps * jnp.exp(0.5 * logvar) + mu
    return lin(z, w_dec_t, b_dec), mu, logvar, z


def kld_loss(mu, logvar):
    # Pure-JAX port of the (unused-in-forward) staticmethod, for completeness.
    return jnp.mean(-0.5 * jnp.sum(1.0 + logvar - mu ** 2 - jnp.exp(logvar), axis=1), axis=0)


if __name__ == "__main__":
    key = jax.random.PRNGKey(0)
    k_x, k_we, k_be, k_wd, k_bd, k_eps = jax.random.split(key, 6)

    B = 8            # batch
    D_in = 256       # encoder input width (lane-dense)
    latent = 128     # small stand-in for latent_dim=1024

    x = jax.random.normal(k_x, (B, D_in), dtype=jnp.float32)
    # Weights stored pre-transposed to (K, N); encoder emits [mu | logvar] fused along N.
    w_enc_t = jax.random.normal(k_we, (D_in, 2 * latent), dtype=jnp.float32) * 0.05
    b_enc = jax.random.normal(k_be, (1, 2 * latent), dtype=jnp.float32) * 0.05
    w_dec_t = jax.random.normal(k_wd, (latent, D_in), dtype=jnp.float32) * 0.05
    b_dec = jax.random.normal(k_bd, (1, D_in), dtype=jnp.float32) * 0.05
    # eps ~ N(0,1), same semantics as torch.randn_like(std) but deterministic.
    eps = jax.random.normal(k_eps, (B, latent), dtype=jnp.float32)

    params = (w_enc_t, b_enc, w_dec_t, b_dec)
    ref = vae_forward_ref(x, params, eps)

    # Exercise both the fully-fused single-call path and the tiled fallback.
    for forced in (False, True):
        out = jax.block_until_ready(vae_forward(x, params, eps, force_tiled=forced))
        recon, mu, logvar, z = out
        assert recon.shape == (B, D_in)
        assert mu.shape == (B, latent) and logvar.shape == (B, latent) and z.shape == (B, latent)
        for got, want in zip(out, ref):
            err = float(jnp.max(jnp.abs(got - want)))
            assert jnp.allclose(got, want, atol=2e-2, rtol=2e-2), (forced, err)

    print("KERNEL_OK")
</pallas_src>

<mosaic_0001>
module attributes {stable_mosaic.version = 11 : i64} {
  func.func @_vae_fused_kernel(%arg0: i32, %arg1: memref<8x256xf32, #tpu.memory_space<vmem>>, %arg2: memref<256x256xf32, #tpu.memory_space<vmem>>, %arg3: memref<1x256xf32, #tpu.memory_space<vmem>>, %arg4: memref<128x256xf32, #tpu.memory_space<vmem>>, %arg5: memref<1x256xf32, #tpu.memory_space<vmem>>, %arg6: memref<8x128xf32, #tpu.memory_space<vmem>>, %arg7: memref<8x256xf32, #tpu.memory_space<vmem>>, %arg8: memref<8x128xf32, #tpu.memory_space<vmem>>, %arg9: memref<8x128xf32, #tpu.memory_space<vmem>>, %arg10: memref<8x128xf32, #tpu.memory_space<vmem>>) attributes {dimension_semantics = [#tpu.dimension_semantics<parallel>], iteration_bounds = array<i64: 2>, scalar_prefetch = 0 : i64, scratch_operands = 0 : i64, tpu.core_type = #tpu.core_type<tc>, window_params = [{transform_indices = @transform_0, window_bounds = array<i64: 8, 256>}, {pipeline_mode = #tpu.pipeline_mode<synchronous>, transform_indices = @transform_1, window_bounds = array<i64: 256, 256>}, {pipeline_mode = #tpu.pipeline_mode<synchronous>, transform_indices = @transform_2, window_bounds = array<i64: 1, 256>}, {pipeline_mode = #tpu.pipeline_mode<synchronous>, transform_indices = @transform_3, window_bounds = array<i64: 128, 256>}, {pipeline_mode = #tpu.pipeline_mode<synchronous>, transform_indices = @transform_4, window_bounds = array<i64: 1, 256>}, {transform_indices = @transform_5, window_bounds = array<i64: 8, 128>}, {transform_indices = @transform_6, window_bounds = array<i64: 8, 256>}, {transform_indices = @transform_7, window_bounds = array<i64: 8, 128>}, {transform_indices = @transform_8, window_bounds = array<i64: 8, 128>}, {transform_indices = @transform_9, window_bounds = array<i64: 8, 128>}]} {
    %c0 = arith.constant 0 : index
    %c0_0 = arith.constant 0 : index
    %0 = vector.load %arg1[%c0, %c0_0] : memref<8x256xf32, #tpu.memory_space<vmem>>, vector<8x256xf32>
    %1 = arith.truncf %0 : vector<8x256xf32> to vector<8x256xbf16>
    %c0_1 = arith.constant 0 : index
    %c0_2 = arith.constant 0 : index
    %2 = vector.load %arg2[%c0_1, %c0_2] : memref<256x256xf32, #tpu.memory_space<vmem>>, vector<256x256xf32>
    %3 = arith.truncf %2 : vector<256x256xf32> to vector<256x256xbf16>
    %cst = arith.constant dense<0.000000e+00> : vector<8x256xf32>
    %4 = tpu.matmul %1, %3, %cst {dimension_numbers = #tpu.dot_dimension_numbers<[1], [0], [0], [1], [0, 0, 1, 1], [], []>} : vector<8x256xbf16>, vector<256x256xbf16>, vector<8x256xf32> -> vector<8x256xf32>
    %c0_3 = arith.constant 0 : index
    %c0_4 = arith.constant 0 : index
    %5 = vector.load %arg3[%c0_3, %c0_4] : memref<1x256xf32, #tpu.memory_space<vmem>>, vector<1x256xf32>
    %6 = vector.broadcast %5 : vector<1x256xf32> to vector<8x256xf32>
    %7 = arith.addf %4, %6 : vector<8x256xf32>
    %8 = vector.extract_strided_slice %7 {offsets = [0, 0], sizes = [8, 128], strides = [1, 1]} : vector<8x256xf32> to vector<8x128xf32>
    %9 = vector.extract_strided_slice %7 {offsets = [0, 128], sizes = [8, 128], strides = [1, 1]} : vector<8x256xf32> to vector<8x128xf32>
    %c0_5 = arith.constant 0 : index
    %c0_6 = arith.constant 0 : index
    %10 = vector.load %arg6[%c0_5, %c0_6] : memref<8x128xf32, #tpu.memory_space<vmem>>, vector<8x128xf32>
    %cst_7 = arith.constant 5.000000e-01 : f32
    %11 = vector.broadcast %cst_7 : f32 to vector<8x128xf32>
    %12 = arith.mulf %11, %9 : vector<8x128xf32>
    %13 = math.exp %12 : vector<8x128xf32>
    %14 = arith.mulf %10, %13 : vector<8x128xf32>
    %15 = arith.addf %14, %8 : vector<8x128xf32>
    %c0_8 = arith.constant 0 : index
    %c0_9 = arith.constant 0 : index
    %16 = vector.load %arg4[%c0_8, %c0_9] : memref<128x256xf32, #tpu.memory_space<vmem>>, vector<128x256xf32>
    %17 = arith.truncf %16 : vector<128x256xf32> to vector<128x256xbf16>
    %18 = arith.truncf %15 : vector<8x128xf32> to vector<8x128xbf16>
    %cst_10 = arith.constant dense<0.000000e+00> : vector<8x256xf32>
    %19 = tpu.matmul %18, %17, %cst_10 {dimension_numbers = #tpu.dot_dimension_numbers<[1], [0], [0], [1], [0, 0, 1, 1], [], []>} : vector<8x128xbf16>, vector<128x256xbf16>, vector<8x256xf32> -> vector<8x256xf32>
    %c0_11 = arith.constant 0 : index
    %c0_12 = arith.constant 0 : index
    %20 = vector.load %arg5[%c0_11, %c0_12] : memref<1x256xf32, #tpu.memory_space<vmem>>, vector<1x256xf32>
    %21 = vector.broadcast %20 : vector<1x256xf32> to vector<8x256xf32>
    %22 = arith.addf %19, %21 : vector<8x256xf32>
    %c0_13 = arith.constant 0 : index
    %c0_14 = arith.constant 0 : index
    %23 = vector.load %arg7[%c0_13, %c0_14] : memref<8x256xf32, #tpu.memory_space<vmem>>, vector<8x256xf32>
    tpu.vector_store %arg7[%c0_13, %c0_14], %22 {strides = array<i32>} : memref<8x256xf32, #tpu.memory_space<vmem>>, vector<8x256xf32>,
    %c0_15 = arith.constant 0 : index
    %c0_16 = arith.constant 0 : index
    %24 = vector.load %arg8[%c0_15, %c0_16] : memref<8x128xf32, #tpu.memory_space<vmem>>, vector<8x128xf32>
    tpu.vector_store %arg8[%c0_15, %c0_16], %8 {strides = array<i32>} : memref<8x128xf32, #tpu.memory_space<vmem>>, vector<8x128xf32>,
    %c0_17 = arith.constant 0 : index
    %c0_18 = arith.constant 0 : index
    %25 = vector.load %arg9[%c0_17, %c0_18] : memref<8x128xf32, #tpu.memory_space<vmem>>, vector<8x128xf32>
    tpu.vector_store %arg9[%c0_17, %c0_18], %9 {strides = array<i32>} : memref<8x128xf32, #tpu.memory_space<vmem>>, vector<8x128xf32>,
    %c0_19 = arith.constant 0 : index
    %c0_20 = arith.constant 0 : index
    %26 = vector.load %arg10[%c0_19, %c0_20] : memref<8x128xf32, #tpu.memory_space<vmem>>, vector<8x128xf32>
    tpu.vector_store %arg10[%c0_19, %c0_20], %15 {strides = array<i32>} : memref<8x128xf32, #tpu.memory_space<vmem>>, vector<8x128xf32>,
    return
  }
  func.func @transform_0(%arg0: i32) -> (i32, i32) {
    %c0_i32 = arith.constant 0 : i32
    %c0_i32_0 = arith.constant 0 : i32
    return %arg0, %c0_i32 : i32, i32
  }
  func.func @transform_1(%arg0: i32) -> (i32, i32) {
    %c0_i32 = arith.constant 0 : i32
    %c0_i32_0 = arith.constant 0 : i32
    %c0_i32_1 = arith.constant 0 : i32
    return %c0_i32, %c0_i32_0 : i32, i32
  }
  func.func @transform_2(%arg0: i32) -> (i32, i32) {
    %c0_i32 = arith.constant 0 : i32
    %c0_i32_0 = arith.constant 0 : i32
    %c0_i32_1 = arith.constant 0 : i32
    return %c0_i32, %c0_i32_0 : i32, i32
  }
  func.func @transform_3(%arg0: i32) -> (i32, i32) {
    %c0_i32 = arith.constant 0 : i32
    %c0_i32_0 = arith.constant 0 : i32
    %c0_i32_1 = arith.constant 0 : i32
    return %c0_i32, %c0_i32_0 : i32, i32
  }
  func.func @transform_4(%arg0: i32) -> (i32, i32) {
    %c0_i32 = arith.constant 0 : i32
    %c0_i32_0 = arith.constant 0 : i32
    %c0_i32_1 = arith.constant 0 : i32
    return %c0_i32, %c0_i32_0 : i32, i32
  }
  func.func @transform_5(%arg0: i32) -> (i32, i32) {
    %c0_i32 = arith.constant 0 : i32
    %c0_i32_0 = arith.constant 0 : i32
    return %arg0, %c0_i32 : i32, i32
  }
  func.func @transform_6(%arg0: i32) -> (i32, i32) {
    %c0_i32 = arith.constant 0 : i32
    %c0_i32_0 = arith.constant 0 : i32
    return %arg0, %c0_i32 : i32, i32
  }
  func.func @transform_7(%arg0: i32) -> (i32, i32) {
    %c0_i32 = arith.constant 0 : i32
    %c0_i32_0 = arith.constant 0 : i32
    return %arg0, %c0_i32 : i32, i32
  }
  func.func @transform_8(%arg0: i32) -> (i32, i32) {
    %c0_i32 = arith.constant 0 : i32
    %c0_i32_0 = arith.constant 0 : i32
    return %arg0, %c0_i32 : i32, i32
  }
  func.func @transform_9(%arg0: i32) -> (i32, i32) {
    %c0_i32 = arith.constant 0 : i32
    %c0_i32_0 = arith.constant 0 : i32
    return %arg0, %c0_i32 : i32, i32
  }
}

</mosaic_0001>

<llo_original>
// kernel: tpu_custom_call.1
$region0: #{tpu_custom_call.1}
  #allocation0 [shape = 'u32[]', space=smem, size = 0x4, offset = 0x4, fixed_abs, tag = 'smem constant byte address 0x4 - core index']
  #allocation1 [shape = 'u32[144,128]{1,0:T(1,128)}', space=vmem, size = 0x12000, scoped, tag = 'internal scratch']
  %s0 = inlined_call_operand.hbm [shape: f32[16,256], index: 0, kind: input, shape index: {}]
  %s1 = inlined_call_operand.hbm [shape: f32[256,256], index: 1, kind: input, shape index: {}]
  %s2 = inlined_call_operand.vmem [shape: f32[1,256], index: 2, kind: input, shape index: {}]
  %s3 = inlined_call_operand.hbm [shape: f32[128,256], index: 3, kind: input, shape index: {}]
  %s4 = inlined_call_operand.hbm [shape: f32[1,256], index: 4, kind: input, shape index: {}]
  %s5 = inlined_call_operand.vmem [shape: f32[16,128], index: 5, kind: input, shape index: {}]
  %s6 = inlined_call_operand.hbm [shape: f32[16,256], index: 6, kind: output, shape index: {0}]
  %s7 = inlined_call_operand.hbm [shape: f32[16,128], index: 7, kind: output, shape index: {1}]
  %s8 = inlined_call_operand.hbm [shape: f32[16,128], index: 8, kind: output, shape index: {2}]
  %s9 = inlined_call_operand.hbm [shape: f32[16,128], index: 9, kind: output, shape index: {3}]
  %10 = xla_tuple %s6, %s7, %s8, %s9
  %s11 = sld [smem:[#allocation0]]
  $region97: #{tpu_custom_call.1} parent=0
    _
  %s13 = ssub.s32 1, %s11
  %s14 = scalar_select 0, %s13, %s11
  $region1: #{tpu_custom_call.1} parent=0
    #allocation2 [shape = 'u8[16384]{0}', space=vmem, size = 0x4000, scoped, tag = 'input window, operand 0']
    #allocation3 [shape = 's32[2]{0}', space=sflag, size = 0x8, scoped, tag = 'scoped memory for tpu_custom_call.1']
    #allocation4 [shape = 's32[2]{0}', space=sflag, size = 0x8, scoped, tag = 'scoped memory for tpu_custom_call.1']
    #allocation5 [shape = 'u8[262144]{0}', space=vmem, size = 0x40000, scoped, tag = 'input window, operand 1, single buffered']
    #allocation6 [shape = 's32[1]{0}', space=sflag, size = 0x4, scoped, tag = 'scoped memory for tpu_custom_call.1']
    #allocation7 [shape = 'u8[131072]{0}', space=vmem, size = 0x20000, scoped, tag = 'input window, operand 3, single buffered']
    #allocation8 [shape = 'u8[1024]{0}', space=vmem, size = 0x400, scoped, tag = 'input window, operand 4, single buffered']
    #allocation9 [shape = 's32[1]{0}', space=sflag, size = 0x4, scoped, tag = 'scoped memory for tpu_custom_call.1']
    #allocation10 [shape = 'u8[16384]{0}', space=vmem, size = 0x4000, scoped, tag = 'output window, operand 0']
    #allocation11 [shape = 'u8[8192]{0}', space=vmem, size = 0x2000, scoped, tag = 'output window, operand 1']
    #allocation12 [shape = 's32[2]{0}', space=sflag, size = 0x8, scoped, tag = 'scoped memory for tpu_custom_call.1']
    #allocation13 [shape = 'u8[8192]{0}', space=vmem, size = 0x2000, scoped, tag = 'output window, operand 2']
    #allocation14 [shape = 'u8[8192]{0}', space=vmem, size = 0x2000, scoped, tag = 'output window, operand 3']
    #allocation15 [shape = 's32[2]{0}', space=sflag, size = 0x8, scoped, tag = 'scoped memory for tpu_custom_call.1']
    %15 = vsyncpa [#allocation3], 0
    %s16 = scalar_lea.sflag [#allocation3], 1
    %17 = vsyncpa %s16, 0
    %18 = vsyncpa [#allocation6], 0
    %19 = vsyncpa [#allocation9], 0
    %20 = vsyncpa [#allocation4], 0
    %s21 = scalar_lea.sflag [#allocation4], 1
    %22 = vsyncpa %s21, 0
    %23 = vsyncpa [#allocation12], 0
    %s24 = scalar_lea.sflag [#allocation12], 1
    %25 = vsyncpa %s24, 0
    %26 = vsyncpa [#allocation15], 0
    %s27 = scalar_lea.sflag [#allocation15], 1
    %28 = vsyncpa %s27, 0
    loop: start=0, step=1, limit=4
    $region2: #{tpu_custom_call.1} parent=1 // loop_pre_header
      _
    $region3: #{tpu_custom_call.1} parent=1 // loop_header
      %s30 = sphi 0, %s34
      %p31 = scmp.ge.s32.totalorder %s30, 4
      %s40 = sphi 0, %s42
      %s43 = sphi 0, %s40
      %s44 = sphi 0, %s43
      %s60 = sphi 0, %s44
      %s64 = sphi 0, %s64
      %s66 = sphi 0, %s64
      %s67 = sphi 0, %s66
      %s81 = sphi 0, %s67
      %s85 = sphi 0, %s85
      %s87 = sphi 0, %s85
      %s88 = sphi 0, %s87
      %s102 = sphi 0, %s88
      %s106 = sphi 0, %s106
      %s108 = sphi 0, %s106
      %s109 = sphi 0, %s108
      %s123 = sphi 0, %s109
      %s127 = sphi 0, %s127
      %s129 = sphi 0, %s127
      %s130 = sphi 0, %s129
      %s144 = sphi 0, %s130
      %s150 = sphi 0, %s152
      %s153 = sphi 0, %s150
      %s154 = sphi 0, %s153
      %s170 = sphi 0, %s154
      %s176 = sphi 0, %s178
      %s179 = sphi 0, %s176
      %s180 = sphi 0, %s179
      %s196 = sphi 0, %s180
      %s202 = sphi 0, %s204
      %s205 = sphi 0, %s202
      %s206 = sphi 0, %s205
      %s222 = sphi 0, %s206
      %s228 = sphi 0, %s230
      %s231 = sphi 0, %s228
      %s232 = sphi 0, %s231
      %s248 = sphi 0, %s232
      %s254 = sphi 0, %s256
      %s257 = sphi 0, %s254
      %s258 = sphi 0, %s257
      %s274 = sphi 0, %s258
    $region4: #{tpu_custom_call.1} parent=1 // loop_header_branch
      %33 = sbr.rel (%p31) target = $region8
    $region5: #{tpu_custom_call.1} parent=1 // loop_body
      %s35 = ssub.s32 %s30, 1
      %s36 = ssub.s32 %s30, 2
      %s37 = sadd.s32 %s30, 1
      %s38 = ssub.s32 %s30, %s37
      %p39 = scmp.eq.s32.totalorder %s38, 0
      %s41 = sadd.s32 %s40, 1
      %s42 = scalar_select %p39, %s40, %s41
      %p45 = pneg %p39
      %p46 = scmp.eq.s32.totalorder %s30, 1
      %p47 = por %p45, %p46
      %p48 = scmp.ne.s32.totalorder %s40, %s43
      %p49 = scmp.eq.s32.totalorder %s30, 0
      %p50 = por %p48, %p49
      %p51 = scmp.ne.s32.totalorder %s40, %s43
      %p52 = scmp.eq.s32.totalorder %s35, 1
      %p53 = por %p51, %p52
      %p54 = scmp.ne.s32.totalorder %s43, %s44
      %p55 = scmp.eq.s32.totalorder %s35, 0
      %p56 = por %p54, %p55
      %p57 = scmp.ne.s32.totalorder %s43, %s44
      %p58 = scmp.eq.s32.totalorder %s36, 1
      %p59 = por %p57, %p58
      %p61 = scmp.ne.s32.totalorder %s44, %s60
      %p62 = scmp.eq.s32.totalorder %s36, 0
      %p63 = por %p61, %p62
      %s65 = sadd.s32 %s64, 1
      %p68 = scmp.eq.s32.totalorder %s30, 1
      %p69 = scmp.ne.s32.totalorder %s64, %s66
      %p70 = scmp.eq.s32.totalorder %s30, 0
      %p71 = por %p69, %p70
      %p72 = scmp.ne.s32.totalorder %s64, %s66
      %p73 = scmp.eq.s32.totalorder %s35, 1
      %p74 = por %p72, %p73
      %p75 = scmp.ne.s32.totalorder %s66, %s67
      %p76 = scmp.eq.s32.totalorder %s35, 0
      %p77 = por %p75, %p76
      %p78 = scmp.ne.s32.totalorder %s66, %s67
      %p79 = scmp.eq.s32.totalorder %s36, 1
      %p80 = por %p78, %p79
      %p82 = scmp.ne.s32.totalorder %s67, %s81
      %p83 = scmp.eq.s32.totalorder %s36, 0
      %p84 = por %p82, %p83
      %s86 = sadd.s32 %s85, 1
      %p89 = scmp.eq.s32.totalorder %s30, 1
      %p90 = scmp.ne.s32.totalorder %s85, %s87
      %p91 = scmp.eq.s32.totalorder %s30, 0
      %p92 = por %p90, %p91
      %p93 = scmp.ne.s32.totalorder %s85, %s87
      %p94 = scmp.eq.s32.totalorder %s35, 1
      %p95 = por %p93, %p94
      %p96 = scmp.ne.s32.totalorder %s87, %s88
      %p97 = scmp.eq.s32.totalorder %s35, 0
      %p98 = por %p96, %p97
      %p99 = scmp.ne.s32.totalorder %s87, %s88
      %p100 = scmp.eq.s32.totalorder %s36, 1
      %p101 = por %p99, %p100
      %p103 = scmp.ne.s32.totalorder %s88, %s102
      %p104 = scmp.eq.s32.totalorder %s36, 0
      %p105 = por %p103, %p104
      %s107 = sadd.s32 %s106, 1
      %p110 = scmp.eq.s32.totalorder %s30, 1
      %p111 = scmp.ne.s32.totalorder %s106, %s108
      %p112 = scmp.eq.s32.totalorder %s30, 0
      %p113 = por %p111, %p112
      %p114 = scmp.ne.s32.totalorder %s106, %s108
      %p115 = scmp.eq.s32.totalorder %s35, 1
      %p116 = por %p114, %p115
      %p117 = scmp.ne.s32.totalorder %s108, %s109
      %p118 = scmp.eq.s32.totalorder %s35, 0
      %p119 = por %p117, %p118
      %p120 = scmp.ne.s32.totalorder %s108, %s109
      %p121 = scmp.eq.s32.totalorder %s36, 1
      %p122 = por %p120, %p121
      %p124 = scmp.ne.s32.totalorder %s109, %s123
      %p125 = scmp.eq.s32.totalorder %s36, 0
      %p126 = por %p124, %p125
      %s128 = sadd.s32 %s127, 1
      %p131 = scmp.eq.s32.totalorder %s30, 1
      %p132 = scmp.ne.s32.totalorder %s127, %s129
      %p133 = scmp.eq.s32.totalorder %s30, 0
      %p134 = por %p132, %p133
      %p135 = scmp.ne.s32.totalorder %s127, %s129
      %p136 = scmp.eq.s32.totalorder %s35, 1
      %p137 = por %p135, %p136
      %p138 = scmp.ne.s32.totalorder %s129, %s130
      %p139 = scmp.eq.s32.totalorder %s35, 0
      %p140 = por %p138, %p139
      %p141 = scmp.ne.s32.totalorder %s129, %s130
      %p142 = scmp.eq.s32.totalorder %s36, 1
      %p143 = por %p141, %p142
      %p145 = scmp.ne.s32.totalorder %s130, %s144
      %p146 = scmp.eq.s32.totalorder %s36, 0
      %p147 = por %p145, %p146
      %s148 = ssub.s32 %s30, %s37
      %p149 = scmp.eq.s32.totalorder %s148, 0
      %s151 = sadd.s32 %s150, 1
      %s152 = scalar_select %p149, %s150, %s151
      %p155 = pneg %p149
      %p156 = scmp.eq.s32.totalorder %s30, 1
      %p157 = por %p155, %p156
      %p158 = scmp.ne.s32.totalorder %s150, %s153
      %p159 = scmp.eq.s32.totalorder %s30, 0
      %p160 = por %p158, %p159
      %p161 = scmp.ne.s32.totalorder %s150, %s153
      %p162 = scmp.eq.s32.totalorder %s35, 1
      %p163 = por %p161, %p162
      %p164 = scmp.ne.s32.totalorder %s153, %s154
      %p165 = scmp.eq.s32.totalorder %s35, 0
      %p166 = por %p164, %p165
      %p167 = scmp.ne.s32.totalorder %s153, %s154
      %p168 = scmp.eq.s32.totalorder %s36, 1
      %p169 = por %p167, %p168
      %p171 = scmp.ne.s32.totalorder %s154, %s170
      %p172 = scmp.eq.s32.totalorder %s36, 0
      %p173 = por %p171, %p172
      %s174 = ssub.s32 %s30, %s37
      %p175 = scmp.eq.s32.totalorder %s174, 0
      %s177 = sadd.s32 %s176, 1
      %s178 = scalar_select %p175, %s176, %s177
      %p181 = pneg %p175
      %p182 = scmp.eq.s32.totalorder %s30, 1
      %p183 = por %p181, %p182
      %p184 = scmp.ne.s32.totalorder %s176, %s179
      %p185 = scmp.eq.s32.totalorder %s30, 0
      %p186 = por %p184, %p185
      %p187 = scmp.ne.s32.totalorder %s176, %s179
      %p188 = scmp.eq.s32.totalorder %s35, 1
      %p189 = por %p187, %p188
      %p190 = scmp.ne.s32.totalorder %s179, %s180
      %p191 = scmp.eq.s32.totalorder %s35, 0
      %p192 = por %p190, %p191
      %p193 = scmp.ne.s32.totalorder %s179, %s180
      %p194 = scmp.eq.s32.totalorder %s36, 1
      %p195 = por %p193, %p194
      %p197 = scmp.ne.s32.totalorder %s180, %s196
      %p198 = scmp.eq.s32.totalorder %s36, 0
      %p199 = por %p197, %p198
      %s200 = ssub.s32 %s30, %s37
      %p201 = scmp.eq.s32.totalorder %s200, 0
      %s203 = sadd.s32 %s202, 1
      %s204 = scalar_select %p201, %s202, %s203
      %p207 = pneg %p201
      %p208 = scmp.eq.s32.totalorder %s30, 1
      %p209 = por %p207, %p208
      %p210 = scmp.ne.s32.totalorder %s202, %s205
      %p211 = scmp.eq.s32.totalorder %s30, 0
      %p212 = por %p210, %p211
      %p213 = scmp.ne.s32.totalorder %s202, %s205
      %p214 = scmp.eq.s32.totalorder %s35, 1
      %p215 = por %p213, %p214
      %p216 = scmp.ne.s32.totalorder %s205, %s206
      %p217 = scmp.eq.s32.totalorder %s35, 0
      %p218 = por %p216, %p217
      %p219 = scmp.ne.s32.totalorder %s205, %s206
      %p220 = scmp.eq.s32.totalorder %s36, 1
      %p221 = por %p219, %p220
      %p223 = scmp.ne.s32.totalorder %s206, %s222
      %p224 = scmp.eq.s32.totalorder %s36, 0
      %p225 = por %p223, %p224
      %s226 = ssub.s32 %s30, %s37
      %p227 = scmp.eq.s32.totalorder %s226, 0
      %s229 = sadd.s32 %s228, 1
      %s230 = scalar_select %p227, %s228, %s229
      %p233 = pneg %p227
      %p234 = scmp.eq.s32.totalorder %s30, 1
      %p235 = por %p233, %p234
      %p236 = scmp.ne.s32.totalorder %s228, %s231
      %p237 = scmp.eq.s32.totalorder %s30, 0
      %p238 = por %p236, %p237
      %p239 = scmp.ne.s32.totalorder %s228, %s231
      %p240 = scmp.eq.s32.totalorder %s35, 1
      %p241 = por %p239, %p240
      %p242 = scmp.ne.s32.totalorder %s231, %s232
      %p243 = scmp.eq.s32.totalorder %s35, 0
      %p244 = por %p242, %p243
      %p245 = scmp.ne.s32.totalorder %s231, %s232
      %p246 = scmp.eq.s32.totalorder %s36, 1
      %p247 = por %p245, %p246
      %p249 = scmp.ne.s32.totalorder %s232, %s248
      %p250 = scmp.eq.s32.totalorder %s36, 0
      %p251 = por %p249, %p250
      %s252 = ssub.s32 %s30, %s37
      %p253 = scmp.eq.s32.totalorder %s252, 0
      %s255 = sadd.s32 %s254, 1
      %s256 = scalar_select %p253, %s254, %s255
      %p259 = pneg %p253
      %p260 = scmp.eq.s32.totalorder %s30, 1
      %p261 = por %p259, %p260
      %p262 = scmp.ne.s32.totalorder %s254, %s257
      %p263 = scmp.eq.s32.totalorder %s30, 0
      %p264 = por %p262, %p263
      %p265 = scmp.ne.s32.totalorder %s254, %s257
      %p266 = scmp.eq.s32.totalorder %s35, 1
      %p267 = por %p265, %p266
      %p268 = scmp.ne.s32.totalorder %s257, %s258
      %p269 = scmp.eq.s32.totalorder %s35, 0
      %p270 = por %p268, %p269
      %p271 = scmp.ne.s32.totalorder %s257, %s258
      %p272 = scmp.eq.s32.totalorder %s36, 1
      %p273 = por %p271, %p272
      %p275 = scmp.ne.s32.totalorder %s258, %s274
      %p276 = scmp.eq.s32.totalorder %s36, 0
      %p277 = por %p275, %p276
      %p278 = scmp.le.s32.totalorder 1, %s30
      %p279 = scmp.lt.s32.totalorder %s30, 3
      %p280 = pnand %p278, %p279
      %p281 = pneg %p280
      // Predicated region
      $region9: #{tpu_custom_call.1} parent=5 // pred_check
        _
      $region10: #{tpu_custom_call.1} parent=5 // pred_check_branch
        %283 = sbr.rel (%p280) target = $region12
      $region11: #{tpu_custom_call.1} parent=5 // pred_region
        %s284 = ssub.s32 %s30, 1
        // Predicated region
        $region13: #{tpu_custom_call.1} parent=11 // pred_check
          %p285 = pneg %p77
        $region14: #{tpu_custom_call.1} parent=11 // pred_check_branch
          %287 = sbr.rel (%p285) target = $region16
        $region15: #{tpu_custom_call.1} parent=11 // pred_region
          %s289 = ssub.s32 8192, 8192
          %290 = vsyncadd [#allocation6], %s289
          %s291 = sshll.u32 [#allocation5], 4
          %s292 = int_to_ptr.vmem [resolvable:$true] %s291
          %297 = dma.hbm_to_vmem [thread:$0]  %s1, 8192, %s292, [#allocation6], 256, 256, 16
        $region16: #{tpu_custom_call.1} parent=11 // pred_fallthru
          _
        // Predicated region
        $region17: #{tpu_custom_call.1} parent=11 // pred_check
          %p298 = pneg %p98
        $region18: #{tpu_custom_call.1} parent=11 // pred_check_branch
          %300 = sbr.rel (%p298) target = $region20
        $region19: #{tpu_custom_call.1} parent=11 // pred_region
          _
        $region20: #{tpu_custom_call.1} parent=11 // pred_fallthru
          _
        // Predicated region
        $region21: #{tpu_custom_call.1} parent=11 // pred_check
          %p301 = pneg %p119
        $region22: #{tpu_custom_call.1} parent=11 // pred_check_branch
          %303 = sbr.rel (%p301) target = $region24
        $region23: #{tpu_custom_call.1} parent=11 // pred_region
          %s305 = ssub.s32 4096, 4096
          %306 = vsyncadd [#allocation6], %s305
          %s307 = sshll.u32 [#allocation7], 4
          %s308 = int_to_ptr.vmem [resolvable:$true] %s307
          %313 = dma.hbm_to_vmem [thread:$0]  %s3, 4096, %s308, [#allocation6], 256, 256, 16
        $region24: #{tpu_custom_call.1} parent=11 // pred_fallthru
          _
        // Predicated region
        $region25: #{tpu_custom_call.1} parent=11 // pred_check
          %p314 = pneg %p140
        $region26: #{tpu_custom_call.1} parent=11 // pred_check_branch
          %316 = sbr.rel (%p314) target = $region28
        $region27: #{tpu_custom_call.1} parent=11 // pred_region
          %s318 = ssub.s32 32, 32
          %319 = vsyncadd [#allocation9], %s318
          %s321 = sshll.u32 [#allocation8], 4
          %s322 = int_to_ptr.vmem [resolvable:$true] %s321
          %324 = dma.hbm_to_vmem [thread:$0]  %s4, 32, %s322, [#allocation9]
        $region28: #{tpu_custom_call.1} parent=11 // pred_fallthru
          _
      $region12: #{tpu_custom_call.1} parent=5 // pred_fallthru
        _
      %p325 = scmp.lt.s32.totalorder %s30, 2
      // Predicated region
      $region29: #{tpu_custom_call.1} parent=5 // pred_check
        %p326 = pneg %p325
      $region30: #{tpu_custom_call.1} parent=5 // pred_check_branch
        %328 = sbr.rel (%p326) target = $region32
      $region31: #{tpu_custom_call.1} parent=5 // pred_region
        // Predicated region
        $region33: #{tpu_custom_call.1} parent=31 // pred_check
          %p329 = pneg %p50
        $region34: #{tpu_custom_call.1} parent=31 // pred_check_branch
          %331 = sbr.rel (%p329) target = $region36
        $region35: #{tpu_custom_call.1} parent=31 // pred_region
          %s332 = sand.u32 %s40, 1
          %s333 = scalar_lea.sflag [#allocation3], %s332
          %s334 = sand.u32 %s40, 1
          %s335 = smul.addr %s334, 16
          %s336 = scalar_lea.vmem [#allocation2], %s335
          %s338 = ssub.s32 256, 256
          %339 = vsyncadd %s333, %s338
          %s340 = smul.addr %s30, 2
          %s341 = smul.addr %s340, 128
          %s342 = scalar_lea.hbm %s0, %s341
          %s344 = sshll.u32 %s336, 4
          %s345 = int_to_ptr.vmem [resolvable:$true] %s344
          %347 = dma.hbm_to_vmem [thread:$0]  %s342, 256, %s345, %s333
        $region36: #{tpu_custom_call.1} parent=31 // pred_fallthru
          _
        // Predicated region
        $region37: #{tpu_custom_call.1} parent=31 // pred_check
          %p348 = pneg %p160
        $region38: #{tpu_custom_call.1} parent=31 // pred_check_branch
          %350 = sbr.rel (%p348) target = $region40
        $region39: #{tpu_custom_call.1} parent=31 // pred_region
          %p351 = scmp.lt.s32.totalorder %s30, 1
          %s352 = scalar_select %p351, %s30, 1
          %s353 = smul.addr %s352, 8
          %s354 = scalar_lea.vmem %s5, %s353
        $region40: #{tpu_custom_call.1} parent=31 // pred_fallthru
          _
      $region32: #{tpu_custom_call.1} parent=5 // pred_fallthru
        _
      %p355 = scmp.le.s32.totalorder 1, %s30
      %p356 = scmp.lt.s32.totalorder %s30, 3
      %p357 = pnand %p355, %p356
      %p358 = pneg %p357
      // Predicated region
      $region41: #{tpu_custom_call.1} parent=5 // pred_check
        _
      $region42: #{tpu_custom_call.1} parent=5 // pred_check_branch
        %360 = sbr.rel (%p357) target = $region44
      $region43: #{tpu_custom_call.1} parent=5 // pred_region
        %s361 = ssub.s32 %s30, 1
        %s362 = sand.u32 %s43, 1
        %s363 = scalar_lea.sflag [#allocation3], %s362
        %s364 = sand.u32 %s43, 1
        %s365 = smul.addr %s364, 16
        %s366 = scalar_lea.vmem [#allocation2], %s365
        // Predicated region
        $region45: #{tpu_custom_call.1} parent=43 // pred_check
          %p367 = pneg %p56
        $region46: #{tpu_custom_call.1} parent=43 // pred_check_branch
          %369 = sbr.rel (%p367) target = $region48
        $region47: #{tpu_custom_call.1} parent=43 // pred_region
          %370 = dma.done %s363, 256
        $region48: #{tpu_custom_call.1} parent=43 // pred_fallthru
          _
        // Predicated region
        $region49: #{tpu_custom_call.1} parent=43 // pred_check
          %p371 = pneg %p77
        $region50: #{tpu_custom_call.1} parent=43 // pred_check_branch
          %373 = sbr.rel (%p371) target = $region52
        $region51: #{tpu_custom_call.1} parent=43 // pred_region
          %374 = dma.done [#allocation6], 8192
        $region52: #{tpu_custom_call.1} parent=43 // pred_fallthru
          _
        // Predicated region
        $region53: #{tpu_custom_call.1} parent=43 // pred_check
          %p375 = pneg %p119
        $region54: #{tpu_custom_call.1} parent=43 // pred_check_branch
          %377 = sbr.rel (%p375) target = $region56
        $region55: #{tpu_custom_call.1} parent=43 // pred_region
          %378 = dma.done [#allocation6], 4096
        $region56: #{tpu_custom_call.1} parent=43 // pred_fallthru
          _
        // Predicated region
        $region57: #{tpu_custom_call.1} parent=43 // pred_check
          %p379 = pneg %p140
        $region58: #{tpu_custom_call.1} parent=43 // pred_check_branch
          %381 = sbr.rel (%p379) target = $region60
        $region59: #{tpu_custom_call.1} parent=43 // pred_region
          %382 = dma.done [#allocation9], 32
        $region60: #{tpu_custom_call.1} parent=43 // pred_fallthru
          _
        %s383 = sand.u32 %s43, 1
        %s384 = scalar_lea.sflag [#allocation3], %s383
        %s385 = sand.u32 %s43, 1
        %s386 = smul.addr %s385, 16
        %s387 = scalar_lea.vmem [#allocation2], %s386
        %p388 = pneg %p56
        %p389 = pneg %p53
        %p390 = pneg %p77
        %p391 = pneg %p74
        %p392 = pneg %p98
        %p393 = pneg %p95
        %p394 = pneg %p119
        %p395 = pneg %p116
        %p396 = pneg %p140
        %p397 = pneg %p137
        %p398 = scmp.lt.s32.totalorder %s35, 1
        %s399 = scalar_select %p398, %s35, 1
        %s400 = smul.addr %s399, 8
        %s401 = scalar_lea.vmem %s5, %s400
        %p402 = pneg %p166
        %p403 = pneg %p163
        %p404 = pneg %p192
        %p405 = pneg %p189
        %s406 = sand.u32 %s179, 1
        %s407 = scalar_lea.sflag [#allocation4], %s406
        %s408 = sand.u32 %s179, 1
        %s409 = smul.addr %s408, 16
        %s410 = scalar_lea.vmem [#allocation10], %s409
        %p411 = pneg %p218
        %p412 = pneg %p215
        %s413 = sand.u32 %s35, 1
        %s414 = scalar_lea.sflag [#allocation12], %s413
        %s415 = sand.u32 %s205, 1
        %s416 = smul.addr %s415, 8
        %s417 = scalar_lea.vmem [#allocation11], %s416
        %p418 = pneg %p244
        %p419 = pneg %p241
        %s420 = sand.u32 %s35, 1
        %s421 = scalar_lea.sflag [#allocation12], %s420
        %s422 = sand.u32 %s231, 1
        %s423 = smul.addr %s422, 8
        %s424 = scalar_lea.vmem [#allocation13], %s423
        %p425 = pneg %p270
        %p426 = pneg %p267
        %s427 = sand.u32 %s257, 1
        %s428 = scalar_lea.sflag [#allocation15], %s427
        %s429 = sand.u32 %s257, 1
        %s430 = smul.addr %s429, 8
        %s431 = scalar_lea.vmem [#allocation14], %s430
        %p432 = scmp.lt.s32.totalorder %s35, 1
        %s433 = scalar_select %p432, %s35, 1
        %s434 = smul.addr %s433, 8
        %s435 = scalar_lea.vmem %s5, %s434
        %v437 = vld [vmem:[%s366] sm:$0xff]
        %v438 = vld [vmem:[%s366 + $0x8] sm:$0xff]
        %v439 = vpack.c.bf16 %v437, %v437
        %v440 = vpack.c.bf16 %v438, %v438
        %v441 = vld [vmem:[#allocation5] sm:$0xff]
        %v442 = vld [vmem:[#allocation5 + $0x8] sm:$0xff]
        %v443 = vld [vmem:[#allocation5 + $0x10] sm:$0xff]
        %v444 = vld [vmem:[#allocation5 + $0x18] sm:$0xff]
        %v445 = vld [vmem:[#allocation5 + $0x20] sm:$0xff]
        %v446 = vld [vmem:[#allocation5 + $0x28] sm:$0xff]
        %v447 = vld [vmem:[#allocation5 + $0x30] sm:$0xff]
        %v448 = vld [vmem:[#allocation5 + $0x38] sm:$0xff]
        %v449 = vld [vmem:[#allocation5 + $0x40] sm:$0xff]
        %v450 = vld [vmem:[#allocation5 + $0x48] sm:$0xff]
        %v451 = vld [vmem:[#allocation5 + $0x50] sm:$0xff]
        %v452 = vld [vmem:[#allocation5 + $0x58] sm:$0xff]
        %v453 = vld [vmem:[#allocation5 + $0x60] sm:$0xff]
        %v454 = vld [vmem:[#allocation5 + $0x68] sm:$0xff]
        %v455 = vld [vmem:[#allocation5 + $0x70] sm:$0xff]
        %v456 = vld [vmem:[#allocation5 + $0x78] sm:$0xff]
        %v457 = vld [vmem:[#allocation5 + $0x80] sm:$0xff]
        %v458 = vld [vmem:[#allocation5 + $0x88] sm:$0xff]
        %v459 = vld [vmem:[#allocation5 + $0x90] sm:$0xff]
        %v460 = vld [vmem:[#allocation5 + $0x98] sm:$0xff]
        %v461 = vld [vmem:[#allocation5 + $0xa0] sm:$0xff]
        %v462 = vld [vmem:[#allocation5 + $0xa8] sm:$0xff]
        %v463 = vld [vmem:[#allocation5 + $0xb0] sm:$0xff]
        %v464 = vld [vmem:[#allocation5 + $0xb8] sm:$0xff]
        %v465 = vld [vmem:[#allocation5 + $0xc0] sm:$0xff]
        %v466 = vld [vmem:[#allocation5 + $0xc8] sm:$0xff]
        %v467 = vld [vmem:[#allocation5 + $0xd0] sm:$0xff]
        %v468 = vld [vmem:[#allocation5 + $0xd8] sm:$0xff]
        %v469 = vld [vmem:[#allocation5 + $0xe0] sm:$0xff]
        %v470 = vld [vmem:[#allocation5 + $0xe8] sm:$0xff]
        %v471 = vld [vmem:[#allocation5 + $0xf0] sm:$0xff]
        %v472 = vld [vmem:[#allocation5 + $0xf8] sm:$0xff]
        %v473 = vld [vmem:[#allocation5 + $0x100] sm:$0xff]
        %v474 = vld [vmem:[#allocation5 + $0x108] sm:$0xff]
        %v475 = vld [vmem:[#allocation5 + $0x110] sm:$0xff]
        %v476 = vld [vmem:[#allocation5 + $0x118] sm:$0xff]
        %v477 = vld [vmem:[#allocation5 + $0x120] sm:$0xff]
        %v478 = vld [vmem:[#allocation5 + $0x128] sm:$0xff]
        %v479 = vld [vmem:[#allocation5 + $0x130] sm:$0xff]
        %v480 = vld [vmem:[#allocation5 + $0x138] sm:$0xff]
        %v481 = vld [vmem:[#allocation5 + $0x140] sm:$0xff]
        %v482 = vld [vmem:[#allocation5 + $0x148] sm:$0xff]
        %v483 = vld [vmem:[#allocation5 + $0x150] sm:$0xff]
        %v484 = vld [vmem:[#allocation5 + $0x158] sm:$0xff]
        %v485 = vld [vmem:[#allocation5 + $0x160] sm:$0xff]
        %v486 = vld [vmem:[#allocation5 + $0x168] sm:$0xff]
        %v487 = vld [vmem:[#allocation5 + $0x170] sm:$0xff]
        %v488 = vld [vmem:[#allocation5 + $0x178] sm:$0xff]
        %v489 = vld [vmem:[#allocation5 + $0x180] sm:$0xff]
        %v490 = vld [vmem:[#allocation5 + $0x188] sm:$0xff]
        %v491 = vld [vmem:[#allocation5 + $0x190] sm:$0xff]
        %v492 = vld [vmem:[#allocation5 + $0x198] sm:$0xff]
        %v493 = vld [vmem:[#allocation5 + $0x1a0] sm:$0xff]
        %v494 = vld [vmem:[#allocation5 + $0x1a8] sm:$0xff]
        %v495 = vld [vmem:[#allocation5 + $0x1b0] sm:$0xff]
        %v496 = vld [vmem:[#allocation5 + $0x1b8] sm:$0xff]
        %v497 = vld [vmem:[#allocation5 + $0x1c0] sm:$0xff]
        %v498 = vld [vmem:[#allocation5 + $0x1c8] sm:$0xff]
        %v499 = vld [vmem:[#allocation5 + $0x1d0] sm:$0xff]
        %v500 = vld [vmem:[#allocation5 + $0x1d8] sm:$0xff]
        %v501 = vld [vmem:[#allocation5 + $0x1e0] sm:$0xff]
        %v502 = vld [vmem:[#allocation5 + $0x1e8] sm:$0xff]
        %v503 = vld [vmem:[#allocation5 + $0x1f0] sm:$0xff]
        %v504 = vld [vmem:[#allocation5 + $0x1f8] sm:$0xff]
        %v505 = vpack.c.bf16 %v443, %v441
        %v506 = vpack.c.bf16 %v444, %v442
        %v507 = vpack.c.bf16 %v447, %v445
        %v508 = vpack.c.bf16 %v448, %v446
        %v509 = vpack.c.bf16 %v451, %v449
        %v510 = vpack.c.bf16 %v452, %v450
        %v511 = vpack.c.bf16 %v455, %v453
        %v512 = vpack.c.bf16 %v456, %v454
        %v513 = vpack.c.bf16 %v459, %v457
        %v514 = vpack.c.bf16 %v460, %v458
        %v515 = vpack.c.bf16 %v463, %v461
        %v516 = vpack.c.bf16 %v464, %v462
        %v517 = vpack.c.bf16 %v467, %v465
        %v518 = vpack.c.bf16 %v468, %v466
        %v519 = vpack.c.bf16 %v471, %v469
        %v520 = vpack.c.bf16 %v472, %v470
        %v521 = vpack.c.bf16 %v475, %v473
        %v522 = vpack.c.bf16 %v476, %v474
        %v523 = vpack.c.bf16 %v479, %v477
        %v524 = vpack.c.bf16 %v480, %v478
        %v525 = vpack.c.bf16 %v483, %v481
        %v526 = vpack.c.bf16 %v484, %v482
        %v527 = vpack.c.bf16 %v487, %v485
        %v528 = vpack.c.bf16 %v488, %v486
        %v529 = vpack.c.bf16 %v491, %v489
        %v530 = vpack.c.bf16 %v492, %v490
        %v531 = vpack.c.bf16 %v495, %v493
        %v532 = vpack.c.bf16 %v496, %v494
        %v533 = vpack.c.bf16 %v499, %v497
        %v534 = vpack.c.bf16 %v500, %v498
        %v535 = vpack.c.bf16 %v503, %v501
        %v536 = vpack.c.bf16 %v504, %v502
        %v537 = vld [vmem:[%s2] sm:$0x3]
        %v539 = vlaneseq
        %v540 = vshrl.u32 %v539, 7
        %v541 = vsub.s32 0, %v540
        %v542 = vrot.slane %v537, %v541
        %v543 = vlaneseq
        %v544 = vshrl.u32 %v543, 7
        %v545 = vsub.s32 1, %v544
        %v546 = vrot.slane %v537, %v545
        %549 = vmatprep.subr.bf16.mxu0 %v506
        %550 = vmatpush1.bf16.msra.mxu0 %v505
        %551 = vmatprep.subr.bf16.mxu0 %v508
        %552 = vmatpush1.bf16.msra.mxu0 %v507
        %553 = vmatprep.subr.bf16.mxu0 %v510
        %554 = vmatpush1.bf16.msra.mxu0 %v509
        %555 = vmatprep.subr.bf16.mxu0 %v512
        %556 = vmatpush1.bf16.msra.mxu0 %v511
        %557 = vmatprep.subr.bf16.mxu0 %v514
        %558 = vmatpush1.bf16.msra.mxu0 %v513
        %559 = vmatprep.subr.bf16.mxu0 %v516
        %560 = vmatpush1.bf16.msra.mxu0 %v515
        %561 = vmatprep.subr.bf16.mxu0 %v518
        %562 = vmatpush1.bf16.msra.mxu0 %v517
        %563 = vmatprep.subr.bf16.mxu0 %v520
        %564 = vmatpush1.bf16.msra.mxu0 %v519
        %565 = vmatprep.subr.bf16.mxu0 %v522
        %566 = vmatpush1.bf16.msra.mxu0 %v521
        %567 = vmatprep.subr.bf16.mxu0 %v524
        %568 = vmatpush1.bf16.msra.mxu0 %v523
        %569 = vmatprep.subr.bf16.mxu0 %v526
        %570 = vmatpush1.bf16.msra.mxu0 %v525
        %571 = vmatprep.subr.bf16.mxu0 %v528
        %572 = vmatpush1.bf16.msra.mxu0 %v527
        %573 = vmatprep.subr.bf16.mxu0 %v530
        %574 = vmatpush1.bf16.msra.mxu0 %v529
        %575 = vmatprep.subr.bf16.mxu0 %v532
        %576 = vmatpush1.bf16.msra.mxu0 %v531
        %577 = vmatprep.subr.bf16.mxu0 %v534
        %578 = vmatpush1.bf16.msra.mxu0 %v533
        %579 = vmatprep.subr.bf16.mxu0 %v536
        %580 = vmatpush1.bf16.msra.mxu0 %v535
        %581 = vmatprep.mubr.bf16.mxu0 %v440
        %582 = vmatmul.mubr.bf16.gmra.mrb[0].mxu0 %v439
        %v583 = vpop.f32.mrb[0].mxu0
        %v584 = vadd.f32 %v542, %v583
        %v585 = vpop.f32.mrb[0].mxu0
        %v586 = vadd.f32 %v546, %v585
        %v587 = vpop.f32.mrb[0].mxu0
        %v588 = vpop.f32.mrb[0].mxu0
        %589 = vdwg.mxu0
        %v590 = vld [vmem:[%s435] sm:$0xff]
        %v591 = vmul.f32 %v586, 0.5
        %v592 = vmul.f32 %v591, 1.442695
        %v593 = vpow.pop %v592
        %v594 = vmul.f32 %v590, %v593
        %v595 = vadd.f32 %v594, %v584
        %v596 = vld [vmem:[#allocation7] sm:$0xff]
        %v597 = vld [vmem:[#allocation7 + $0x8] sm:$0xff]
        %v598 = vld [vmem:[#allocation7 + $0x10] sm:$0xff]
        %v599 = vld [vmem:[#allocation7 + $0x18] sm:$0xff]
        %v600 = vld [vmem:[#allocation7 + $0x20] sm:$0xff]
        %v601 = vld [vmem:[#allocation7 + $0x28] sm:$0xff]
        %v602 = vld [vmem:[#allocation7 + $0x30] sm:$0xff]
        %v603 = vld [vmem:[#allocation7 + $0x38] sm:$0xff]
        %v604 = vld [vmem:[#allocation7 + $0x40] sm:$0xff]
        %v605 = vld [vmem:[#allocation7 + $0x48] sm:$0xff]
        %v606 = vld [vmem:[#allocation7 + $0x50] sm:$0xff]
        %v607 = vld [vmem:[#allocation7 + $0x58] sm:$0xff]
        %v608 = vld [vmem:[#allocation7 + $0x60] sm:$0xff]
        %v609 = vld [vmem:[#allocation7 + $0x68] sm:$0xff]
        %v610 = vld [vmem:[#allocation7 + $0x70] sm:$0xff]
        %v611 = vld [vmem:[#allocation7 + $0x78] sm:$0xff]
        %v612 = vld [vmem:[#allocation7 + $0x80] sm:$0xff]
        %v613 = vld [vmem:[#allocation7 + $0x88] sm:$0xff]
        %v614 = vld [vmem:[#allocation7 + $0x90] sm:$0xff]
        %v615 = vld [vmem:[#allocation7 + $0x98] sm:$0xff]
        %v616 = vld [vmem:[#allocation7 + $0xa0] sm:$0xff]
        %v617 = vld [vmem:[#allocation7 + $0xa8] sm:$0xff]
        %v618 = vld [vmem:[#allocation7 + $0xb0] sm:$0xff]
        %v619 = vld [vmem:[#allocation7 + $0xb8] sm:$0xff]
        %v620 = vld [vmem:[#allocation7 + $0xc0] sm:$0xff]
        %v621 = vld [vmem:[#allocation7 + $0xc8] sm:$0xff]
        %v622 = vld [vmem:[#allocation7 + $0xd0] sm:$0xff]
        %v623 = vld [vmem:[#allocation7 + $0xd8] sm:$0xff]
        %v624 = vld [vmem:[#allocation7 + $0xe0] sm:$0xff]
        %v625 = vld [vmem:[#allocation7 + $0xe8] sm:$0xff]
        %v626 = vld [vmem:[#allocation7 + $0xf0] sm:$0xff]
        %v627 = vld [vmem:[#allocation7 + $0xf8] sm:$0xff]
        %v628 = vpack.c.bf16 %v598, %v596
        %v629 = vpack.c.bf16 %v599, %v597
        %v630 = vpack.c.bf16 %v602, %v600
        %v631 = vpack.c.bf16 %v603, %v601
        %v632 = vpack.c.bf16 %v606, %v604
        %v633 = vpack.c.bf16 %v607, %v605
        %v634 = vpack.c.bf16 %v610, %v608
        %v635 = vpack.c.bf16 %v611, %v609
        %v636 = vpack.c.bf16 %v614, %v612
        %v637 = vpack.c.bf16 %v615, %v613
        %v638 = vpack.c.bf16 %v618, %v616
        %v639 = vpack.c.bf16 %v619, %v617
        %v640 = vpack.c.bf16 %v622, %v620
        %v641 = vpack.c.bf16 %v623, %v621
        %v642 = vpack.c.bf16 %v626, %v624
        %v643 = vpack.c.bf16 %v627, %v625
        %v644 = vpack.c.bf16 %v595, %v595
        %v645 = vld [vmem:[#allocation8] sm:$0x3]
        %v647 = vlaneseq
        %v648 = vshrl.u32 %v647, 7
        %v649 = vsub.s32 0, %v648
        %v650 = vrot.slane %v645, %v649
        %v651 = vlaneseq
        %v652 = vshrl.u32 %v651, 7
        %v653 = vsub.s32 1, %v652
        %v654 = vrot.slane %v645, %v653
        %657 = vmatprep.subr.bf16.mxu0 %v629
        %658 = vmatpush1.bf16.msra.mxu0 %v628
        %659 = vmatprep.subr.bf16.mxu0 %v631
        %660 = vmatpush1.bf16.msra.mxu0 %v630
        %661 = vmatprep.subr.bf16.mxu0 %v633
        %662 = vmatpush1.bf16.msra.mxu0 %v632
        %663 = vmatprep.subr.bf16.mxu0 %v635
        %664 = vmatpush1.bf16.msra.mxu0 %v634
        %665 = vmatprep.subr.bf16.mxu0 %v637
        %666 = vmatpush1.bf16.msra.mxu0 %v636
        %667 = vmatprep.subr.bf16.mxu0 %v639
        %668 = vmatpush1.bf16.msra.mxu0 %v638
        %669 = vmatprep.subr.bf16.mxu0 %v641
        %670 = vmatpush1.bf16.msra.mxu0 %v640
        %671 = vmatprep.subr.bf16.mxu0 %v643
        %672 = vmatpush1.bf16.msra.mxu0 %v642
        %673 = vmatprep.subr.bf16.mxu0 0
        %674 = vmatpush1.bf16.msra.mxu0 0
        %675 = vmatprep.subr.bf16.mxu0 0
        %676 = vmatpush1.bf16.msra.mxu0 0
        %677 = vmatprep.subr.bf16.mxu0 0
        %678 = vmatpush1.bf16.msra.mxu0 0
        %679 = vmatprep.subr.bf16.mxu0 0
        %680 = vmatpush1.bf16.msra.mxu0 0
        %681 = vmatprep.subr.bf16.mxu0 0
        %682 = vmatpush1.bf16.msra.mxu0 0
        %683 = vmatprep.subr.bf16.mxu0 0
        %684 = vmatpush1.bf16.msra.mxu0 0
        %685 = vmatprep.subr.bf16.mxu0 0
        %686 = vmatpush1.bf16.msra.mxu0 0
        %687 = vmatprep.subr.bf16.mxu0 0
        %688 = vmatpush1.bf16.msra.mxu0 0
        %689 = vmatprep.mubr.bf16.mxu0 0
        %690 = vmatmul.mubr.bf16.gmra.mrb[0].mxu0 %v644
        %v691 = vpop.f32.mrb[0].mxu0
        %v692 = vadd.f32 %v650, %v691
        %v693 = vpop.f32.mrb[0].mxu0
        %v694 = vadd.f32 %v654, %v693
        %v695 = vpop.f32.mrb[0].mxu0
        %v696 = vpop.f32.mrb[0].mxu0
        %697 = vdwg.mxu0
        %698 = vst [vmem:[%s410] sm:$0xff] %v692
        %699 = vst [vmem:[%s410 + $0x8] sm:$0xff] %v694
        %700 = vst [vmem:[%s417] sm:$0xff] %v584
        %701 = vst [vmem:[%s424] sm:$0xff] %v586
        %702 = vst [vmem:[%s431] sm:$0xff] %v595
        %s703 = sand.u32 %s179, 1
        %s704 = scalar_lea.sflag [#allocation4], %s703
        %s705 = sand.u32 %s179, 1
        %s706 = smul.addr %s705, 16
        %s707 = scalar_lea.vmem [#allocation10], %s706
        %s708 = sand.u32 %s35, 1
        %s709 = scalar_lea.sflag [#allocation12], %s708
        %s710 = sand.u32 %s205, 1
        %s711 = smul.addr %s710, 8
        %s712 = scalar_lea.vmem [#allocation11], %s711
        %s713 = sand.u32 %s35, 1
        %s714 = scalar_lea.sflag [#allocation12], %s713
        %s715 = sand.u32 %s231, 1
        %s716 = smul.addr %s715, 8
        %s717 = scalar_lea.vmem [#allocation13], %s716
        %s718 = sand.u32 %s257, 1
        %s719 = scalar_lea.sflag [#allocation15], %s718
        %s720 = sand.u32 %s257, 1
        %s721 = smul.addr %s720, 8
        %s722 = scalar_lea.vmem [#allocation14], %s721
        // Predicated region
        $region61: #{tpu_custom_call.1} parent=43 // pred_check
          %p723 = pneg %p189
        $region62: #{tpu_custom_call.1} parent=43 // pred_check_branch
          %725 = sbr.rel (%p723) target = $region64
        $region63: #{tpu_custom_call.1} parent=43 // pred_region
          %s727 = ssub.s32 256, 256
          %728 = vsyncadd %s704, %s727
          %s729 = smul.addr %s35, 2
          %s730 = smul.addr %s729, 128
          %s731 = scalar_lea.hbm %s6, %s730
          %s733 = sshll.u32 %s707, 4
          %s734 = int_to_ptr.vmem [resolvable:$true] %s733
          %736 = dma.vmem_to_hbm [thread:$0]  %s734, 256, %s731, %s704
        $region64: #{tpu_custom_call.1} parent=43 // pred_fallthru
          _
        // Predicated region
        $region65: #{tpu_custom_call.1} parent=43 // pred_check
          %p737 = pneg %p215
        $region66: #{tpu_custom_call.1} parent=43 // pred_check_branch
          %739 = sbr.rel (%p737) target = $region68
        $region67: #{tpu_custom_call.1} parent=43 // pred_region
          %s741 = ssub.s32 128, 128
          %742 = vsyncadd %s709, %s741
          %s743 = smul.addr %s35, 128
          %s744 = scalar_lea.hbm %s7, %s743
          %s746 = sshll.u32 %s712, 4
          %s747 = int_to_ptr.vmem [resolvable:$true] %s746
          %749 = dma.vmem_to_hbm [thread:$0]  %s747, 128, %s744, %s709
        $region68: #{tpu_custom_call.1} parent=43 // pred_fallthru
          _
        // Predicated region
        $region69: #{tpu_custom_call.1} parent=43 // pred_check
          %p750 = pneg %p241
        $region70: #{tpu_custom_call.1} parent=43 // pred_check_branch
          %752 = sbr.rel (%p750) target = $region72
        $region71: #{tpu_custom_call.1} parent=43 // pred_region
          %s754 = ssub.s32 128, 128
          %755 = vsyncadd %s714, %s754
          %s756 = smul.addr %s35, 128
          %s757 = scalar_lea.hbm %s8, %s756
          %s759 = sshll.u32 %s717, 4
          %s760 = int_to_ptr.vmem [resolvable:$true] %s759
          %762 = dma.vmem_to_hbm [thread:$0]  %s760, 128, %s757, %s714
        $region72: #{tpu_custom_call.1} parent=43 // pred_fallthru
          _
        // Predicated region
        $region73: #{tpu_custom_call.1} parent=43 // pred_check
          %p763 = pneg %p267
        $region74: #{tpu_custom_call.1} parent=43 // pred_check_branch
          %765 = sbr.rel (%p763) target = $region76
        $region75: #{tpu_custom_call.1} parent=43 // pred_region
          %s767 = ssub.s32 128, 128
          %768 = vsyncadd %s719, %s767
          %s769 = smul.addr %s35, 128
          %s770 = scalar_lea.hbm %s9, %s769
          %s772 = sshll.u32 %s722, 4
          %s773 = int_to_ptr.vmem [resolvable:$true] %s772
          %775 = dma.vmem_to_hbm [thread:$0]  %s773, 128, %s770, %s719
        $region76: #{tpu_custom_call.1} parent=43 // pred_fallthru
          _
      $region44: #{tpu_custom_call.1} parent=5 // pred_fallthru
        _
      %p776 = scmp.le.s32.totalorder 2, %s30
      // Predicated region
      $region77: #{tpu_custom_call.1} parent=5 // pred_check
        %p777 = pneg %p776
      $region78: #{tpu_custom_call.1} parent=5 // pred_check_branch
        %779 = sbr.rel (%p777) target = $region80
      $region79: #{tpu_custom_call.1} parent=5 // pred_region
        %s780 = ssub.s32 %s30, 2
        // Predicated region
        $region81: #{tpu_custom_call.1} parent=79 // pred_check
          %p781 = pneg %p195
        $region82: #{tpu_custom_call.1} parent=79 // pred_check_branch
          %783 = sbr.rel (%p781) target = $region84
        $region83: #{tpu_custom_call.1} parent=79 // pred_region
          %s784 = sand.u32 %s180, 1
          %s785 = scalar_lea.sflag [#allocation4], %s784
          %s786 = sand.u32 %s180, 1
          %s787 = smul.addr %s786, 16
          %s788 = scalar_lea.vmem [#allocation10], %s787
          %789 = dma.done %s785, 256
        $region84: #{tpu_custom_call.1} parent=79 // pred_fallthru
          _
        // Predicated region
        $region85: #{tpu_custom_call.1} parent=79 // pred_check
          %p790 = pneg %p221
        $region86: #{tpu_custom_call.1} parent=79 // pred_check_branch
          %792 = sbr.rel (%p790) target = $region88
        $region87: #{tpu_custom_call.1} parent=79 // pred_region
          %s793 = sand.u32 %s36, 1
          %s794 = scalar_lea.sflag [#allocation12], %s793
          %s795 = sand.u32 %s206, 1
          %s796 = smul.addr %s795, 8
          %s797 = scalar_lea.vmem [#allocation11], %s796
          %798 = dma.done %s794, 128
        $region88: #{tpu_custom_call.1} parent=79 // pred_fallthru
          _
        // Predicated region
        $region89: #{tpu_custom_call.1} parent=79 // pred_check
          %p799 = pneg %p247
        $region90: #{tpu_custom_call.1} parent=79 // pred_check_branch
          %801 = sbr.rel (%p799) target = $region92
        $region91: #{tpu_custom_call.1} parent=79 // pred_region
          %s802 = sand.u32 %s36, 1
          %s803 = scalar_lea.sflag [#allocation12], %s802
          %s804 = sand.u32 %s232, 1
          %s805 = smul.addr %s804, 8
          %s806 = scalar_lea.vmem [#allocation13], %s805
          %807 = dma.done %s803, 128
        $region92: #{tpu_custom_call.1} parent=79 // pred_fallthru
          _
        // Predicated region
        $region93: #{tpu_custom_call.1} parent=79 // pred_check
          %p808 = pneg %p273
        $region94: #{tpu_custom_call.1} parent=79 // pred_check_branch
          %810 = sbr.rel (%p808) target = $region96
        $region95: #{tpu_custom_call.1} parent=79 // pred_region
          %s811 = sand.u32 %s258, 1
          %s812 = scalar_lea.sflag [#allocation15], %s811
          %s813 = sand.u32 %s258, 1
          %s814 = smul.addr %s813, 8
          %s815 = scalar_lea.vmem [#allocation14], %s814
          %816 = dma.done %s812, 128
        $region96: #{tpu_custom_call.1} parent=79 // pred_fallthru
          _
      $region80: #{tpu_custom_call.1} parent=5 // pred_fallthru
        _
    $region6: #{tpu_custom_call.1} parent=1 // loop_footer
      %s34 = sadd.s32 1, %s30
    $region7: #{tpu_custom_call.1} parent=1 // loop_footer_branch
      %29 = sbr.rel target = $region3
    $region8: #{tpu_custom_call.1} parent=1 // loop_exit
      _
    %817 = vsyncpa [#allocation3], 1
    %s818 = scalar_lea.sflag [#allocation3], 1
    %819 = vsyncpa %s818, 1
    %820 = vsyncpa [#allocation6], 1
    %821 = vsyncpa [#allocation9], 1
    %822 = vsyncpa [#allocation4], 1
    %s823 = scalar_lea.sflag [#allocation4], 1
    %824 = vsyncpa %s823, 1
    %825 = vsyncpa [#allocation12], 1
    %s826 = scalar_lea.sflag [#allocation12], 1
    %827 = vsyncpa %s826, 1
    %828 = vsyncpa [#allocation15], 1
    %s829 = scalar_lea.sflag [#allocation15], 1
    %830 = vsyncpa %s829, 1

</llo_original>
